<compile_context>
chip_gen: v5e
topology: v5e:2x2
jax: 0.10.0
libtpu: 0.0.40
codegen_flags: <defaults>
</compile_context>

<pallas_src>
import jax
import jax.numpy as jnp
from jax.experimental import pallas as pl
from jax.experimental.pallas import tpu as pltpu

N_FEATURE = 8
N_STATES = 480 + N_FEATURE   # 488
N_ACTIONS = 2
H1, H2, H3 = 1000, 200, 50

# Lane-padded widths used inside the kernel.
IN_PAD = 512      # 488 -> 512
H2_PAD = 256      # 200 -> 256   (fc1+fc2 folded output width)
H3_PAD = 128      # 50  -> 128
OUT_PAD = 128     # 2   -> 128   (real output sliced out in the wrapper)

WEIGHT_DTYPE = jnp.float32   # jnp.bfloat16 halves weight DMA; f32 keeps exact module numerics.


def _round_up(x, m):
    return (x + m - 1) // m * m


def _mlp_kernel(x_ref, w12_ref, b12_ref, w3_ref, b3_ref, w4_ref, b4_ref, o_ref):
    """One batch tile: (fc1∘fc2 folded) -> fc3 -> relu -> out, all in VMEM."""
    x = x_ref[...]                                                     # (TB, 512)
    h = jnp.dot(x, w12_ref[...], preferred_element_type=jnp.float32) + b12_ref[...]
    h = jnp.dot(h, w3_ref[...], preferred_element_type=jnp.float32) + b3_ref[...]
    h = jnp.maximum(h, 0.0)                                            # ReLU after fc3 only
    y = jnp.dot(h, w4_ref[...], preferred_element_type=jnp.float32) + b4_ref[...]
    o_ref[...] = y.astype(o_ref.dtype)


def prepare_params(params, dtype=WEIGHT_DTYPE):
    """Fold fc1·fc2 and zero-pad all weights/biases to lane-dense shapes.

    Call once per weight update; the result is what new_net_forward consumes.
    """
    (w1, b1), (w2, b2), (w3, b3), (w4, b4) = params
    # Exact fold: no nonlinearity between fc1 and fc2.
    w12 = jnp.dot(w1, w2, preferred_element_type=jnp.float32)          # (488, 200)
    b12 = jnp.dot(b1, w2, preferred_element_type=jnp.float32) + b2     # (1, 200)

    def pad2(a, rows, cols):
        out = jnp.zeros((rows, cols), jnp.float32)
        return out.at[:a.shape[0], :a.shape[1]].set(a).astype(dtype)

    return (pad2(w12, IN_PAD, H2_PAD), pad2(b12, 1, H2_PAD),
            pad2(w3, H2_PAD, H3_PAD), pad2(b3, 1, H3_PAD),
            pad2(w4, H3_PAD, OUT_PAD), pad2(b4, 1, OUT_PAD))


def new_net_forward(x, prepped):
    """x: (B, 488) float32; prepped: output of prepare_params. Returns (B, 2)."""
    w12, b12, w3, b3, w4, b4 = prepped
    B = x.shape[0]

    # Batch tile: big enough to fill MXU rows at large B, sublane-aligned at small B.
    TB = 256 if B >= 256 else _round_up(B, 8)
    B_pad = _round_up(B, TB)

    # Zero-pad the input to (B_pad, IN_PAD); padded columns hit zero weight rows.
    x_p = jnp.zeros((B_pad, IN_PAD), jnp.float32).at[:B, :N_STATES].set(x)

    resident = lambda i: (0, 0)   # weights/biases: same block every grid step -> VMEM-resident
    out_pad = pl.pallas_call(
        _mlp_kernel,
        out_shape=jax.ShapeDtypeStruct((B_pad, OUT_PAD), jnp.float32),
        grid=(B_pad // TB,),
        in_specs=[
            pl.BlockSpec((TB, IN_PAD), lambda i: (i, 0)),      # x tile streams
            pl.BlockSpec((IN_PAD, H2_PAD), resident),          # W12
            pl.BlockSpec((1, H2_PAD), resident),               # b12
            pl.BlockSpec((H2_PAD, H3_PAD), resident),          # W3
            pl.BlockSpec((1, H3_PAD), resident),               # b3
            pl.BlockSpec((H3_PAD, OUT_PAD), resident),         # W4
            pl.BlockSpec((1, OUT_PAD), resident),              # b4
        ],
        out_specs=pl.BlockSpec((TB, OUT_PAD), lambda i: (i, 0)),
        compiler_params=pltpu.CompilerParams(
            dimension_semantics=("parallel",)),                # shards batch across TCs on v7x
    )(x_p, w12, b12, w3, b3, w4, b4)

    return out_pad[:B, :N_ACTIONS]


def init_params(key):
    """Parameter init mirroring the module's __init__.

    Weights ~ N(0, 0.1) (as in the PyTorch code); biases use PyTorch Linear's
    default U(-1/sqrt(fan_in), 1/sqrt(fan_in)).  Weights are stored as
    (in_features, out_features) for y = x @ W + b.
    """
    dims = [(N_STATES, H1), (H1, H2), (H2, H3), (H3, N_ACTIONS)]
    params = []
    for (fan_in, fan_out) in dims:
        key, kw, kb = jax.random.split(key, 3)
        w = 0.1 * jax.random.normal(kw, (fan_in, fan_out), dtype=jnp.float32)
        bound = 1.0 / jnp.sqrt(jnp.float32(fan_in))
        b = jax.random.uniform(kb, (1, fan_out), dtype=jnp.float32,
                               minval=-bound, maxval=bound)
        params.append((w, b))
    return params


def reference_forward(x, params):
    """Unfolded, unpadded, layer-by-layer f32 reference (the module spec)."""
    (w1, b1), (w2, b2), (w3, b3), (w4, b4) = params
    h = x @ w1 + b1
    h = h @ w2 + b2
    h = h @ w3 + b3
    h = jnp.maximum(h, 0.0)
    return h @ w4 + b4


if __name__ == "__main__":
    key = jax.random.PRNGKey(0)
    key, kx = jax.random.split(key)
    B = 8
    x = jax.random.normal(kx, (B, N_STATES), dtype=jnp.float32)
    params = init_params(key)

    prepped = prepare_params(params)          # one-time fold + pad (amortized over calls)
    fwd = jax.jit(new_net_forward)

    out = fwd(x, prepped)
    out = jax.block_until_ready(out)

    ref = reference_forward(x, params)
    assert out.shape == (B, N_ACTIONS), out.shape
    assert jnp.allclose(out, ref, atol=2e-3, rtol=2e-3), (
        f"max abs diff {jnp.max(jnp.abs(out - ref))}")
    print("KERNEL_OK")
</pallas_src>

<mosaic_0001>
module attributes {stable_mosaic.version = 11 : i64} {
  func.func @_mlp_kernel(%arg0: i32, %arg1: memref<8x512xf32, #tpu.memory_space<vmem>>, %arg2: memref<512x256xf32, #tpu.memory_space<vmem>>, %arg3: memref<1x256xf32, #tpu.memory_space<vmem>>, %arg4: memref<256x128xf32, #tpu.memory_space<vmem>>, %arg5: memref<1x128xf32, #tpu.memory_space<vmem>>, %arg6: memref<128x128xf32, #tpu.memory_space<vmem>>, %arg7: memref<1x128xf32, #tpu.memory_space<vmem>>, %arg8: memref<8x128xf32, #tpu.memory_space<vmem>>) attributes {dimension_semantics = [#tpu.dimension_semantics<parallel>], iteration_bounds = array<i64: 1>, scalar_prefetch = 0 : i64, scratch_operands = 0 : i64, tpu.core_type = #tpu.core_type<tc>, window_params = [{transform_indices = @transform_0, window_bounds = array<i64: 8, 512>}, {pipeline_mode = #tpu.pipeline_mode<synchronous>, transform_indices = @transform_1, window_bounds = array<i64: 512, 256>}, {pipeline_mode = #tpu.pipeline_mode<synchronous>, transform_indices = @transform_2, window_bounds = array<i64: 1, 256>}, {pipeline_mode = #tpu.pipeline_mode<synchronous>, transform_indices = @transform_3, window_bounds = array<i64: 256, 128>}, {pipeline_mode = #tpu.pipeline_mode<synchronous>, transform_indices = @transform_4, window_bounds = array<i64: 1, 128>}, {pipeline_mode = #tpu.pipeline_mode<synchronous>, transform_indices = @transform_5, window_bounds = array<i64: 128, 128>}, {pipeline_mode = #tpu.pipeline_mode<synchronous>, transform_indices = @transform_6, window_bounds = array<i64: 1, 128>}, {transform_indices = @transform_7, window_bounds = array<i64: 8, 128>}]} {
    %c0 = arith.constant 0 : index
    %c0_0 = arith.constant 0 : index
    %0 = vector.load %arg1[%c0, %c0_0] : memref<8x512xf32, #tpu.memory_space<vmem>>, vector<8x512xf32>
    %c0_1 = arith.constant 0 : index
    %c0_2 = arith.constant 0 : index
    %1 = vector.load %arg2[%c0_1, %c0_2] : memref<512x256xf32, #tpu.memory_space<vmem>>, vector<512x256xf32>
    %cst = arith.constant dense<0.000000e+00> : vector<8x256xf32>
    %2 = tpu.matmul %0, %1, %cst {dimension_numbers = #tpu.dot_dimension_numbers<[1], [0], [0], [1], [0, 0, 1, 1], [], []>} : vector<8x512xf32>, vector<512x256xf32>, vector<8x256xf32> -> vector<8x256xf32>
    %c0_3 = arith.constant 0 : index
    %c0_4 = arith.constant 0 : index
    %3 = vector.load %arg3[%c0_3, %c0_4] : memref<1x256xf32, #tpu.memory_space<vmem>>, vector<1x256xf32>
    %4 = vector.broadcast %3 : vector<1x256xf32> to vector<8x256xf32>
    %5 = arith.addf %2, %4 : vector<8x256xf32>
    %c0_5 = arith.constant 0 : index
    %c0_6 = arith.constant 0 : index
    %6 = vector.load %arg4[%c0_5, %c0_6] : memref<256x128xf32, #tpu.memory_space<vmem>>, vector<256x128xf32>
    %cst_7 = arith.constant dense<0.000000e+00> : vector<8x128xf32>
    %7 = tpu.matmul %5, %6, %cst_7 {dimension_numbers = #tpu.dot_dimension_numbers<[1], [0], [0], [1], [0, 0, 1, 1], [], []>} : vector<8x256xf32>, vector<256x128xf32>, vector<8x128xf32> -> vector<8x128xf32>
    %c0_8 = arith.constant 0 : index
    %c0_9 = arith.constant 0 : index
    %8 = vector.load %arg5[%c0_8, %c0_9] : memref<1x128xf32, #tpu.memory_space<vmem>>, vector<1x128xf32>
    %9 = vector.broadcast %8 : vector<1x128xf32> to vector<8x128xf32>
    %10 = arith.addf %7, %9 : vector<8x128xf32>
    %cst_10 = arith.constant 0.000000e+00 : f32
    %11 = vector.broadcast %cst_10 : f32 to vector<8x128xf32>
    %12 = arith.maximumf %10, %11 : vector<8x128xf32>
    %c0_11 = arith.constant 0 : index
    %c0_12 = arith.constant 0 : index
    %13 = vector.load %arg6[%c0_11, %c0_12] : memref<128x128xf32, #tpu.memory_space<vmem>>, vector<128x128xf32>
    %cst_13 = arith.constant dense<0.000000e+00> : vector<8x128xf32>
    %14 = tpu.matmul %12, %13, %cst_13 {dimension_numbers = #tpu.dot_dimension_numbers<[1], [0], [0], [1], [0, 0, 1, 1], [], []>} : vector<8x128xf32>, vector<128x128xf32>, vector<8x128xf32> -> vector<8x128xf32>
    %c0_14 = arith.constant 0 : index
    %c0_15 = arith.constant 0 : index
    %15 = vector.load %arg7[%c0_14, %c0_15] : memref<1x128xf32, #tpu.memory_space<vmem>>, vector<1x128xf32>
    %16 = vector.broadcast %15 : vector<1x128xf32> to vector<8x128xf32>
    %17 = arith.addf %14, %16 : vector<8x128xf32>
    %c0_16 = arith.constant 0 : index
    %c0_17 = arith.constant 0 : index
    %18 = vector.load %arg8[%c0_16, %c0_17] : memref<8x128xf32, #tpu.memory_space<vmem>>, vector<8x128xf32>
    tpu.vector_store %arg8[%c0_16, %c0_17], %17 {strides = array<i32>} : memref<8x128xf32, #tpu.memory_space<vmem>>, vector<8x128xf32>,
    return
  }
  func.func @transform_0(%arg0: i32) -> (i32, i32) {
    %c0_i32 = arith.constant 0 : i32
    %c0_i32_0 = arith.constant 0 : i32
    return %arg0, %c0_i32 : i32, i32
  }
  func.func @transform_1(%arg0: i32) -> (i32, i32) {
    %c0_i32 = arith.constant 0 : i32
    %c0_i32_0 = arith.constant 0 : i32
    %c0_i32_1 = arith.constant 0 : i32
    return %c0_i32, %c0_i32_0 : i32, i32
  }
  func.func @transform_2(%arg0: i32) -> (i32, i32) {
    %c0_i32 = arith.constant 0 : i32
    %c0_i32_0 = arith.constant 0 : i32
    %c0_i32_1 = arith.constant 0 : i32
    return %c0_i32, %c0_i32_0 : i32, i32
  }
  func.func @transform_3(%arg0: i32) -> (i32, i32) {
    %c0_i32 = arith.constant 0 : i32
    %c0_i32_0 = arith.constant 0 : i32
    %c0_i32_1 = arith.constant 0 : i32
    return %c0_i32, %c0_i32_0 : i32, i32
  }
  func.func @transform_4(%arg0: i32) -> (i32, i32) {
    %c0_i32 = arith.constant 0 : i32
    %c0_i32_0 = arith.constant 0 : i32
    %c0_i32_1 = arith.constant 0 : i32
    return %c0_i32, %c0_i32_0 : i32, i32
  }
  func.func @transform_5(%arg0: i32) -> (i32, i32) {
    %c0_i32 = arith.constant 0 : i32
    %c0_i32_0 = arith.constant 0 : i32
    %c0_i32_1 = arith.constant 0 : i32
    return %c0_i32, %c0_i32_0 : i32, i32
  }
  func.func @transform_6(%arg0: i32) -> (i32, i32) {
    %c0_i32 = arith.constant 0 : i32
    %c0_i32_0 = arith.constant 0 : i32
    %c0_i32_1 = arith.constant 0 : i32
    return %c0_i32, %c0_i32_0 : i32, i32
  }
  func.func @transform_7(%arg0: i32) -> (i32, i32) {
    %c0_i32 = arith.constant 0 : i32
    %c0_i32_0 = arith.constant 0 : i32
    return %arg0, %c0_i32 : i32, i32
  }
}

</mosaic_0001>

<llo_original>
// kernel: new_net_forward.1
$region0: #{new_net_forward.1}
  #allocation0 [shape = 'u32[]', space=smem, size = 0x4, offset = 0x4, fixed_abs, tag = 'smem constant byte address 0x4 - core index']
  #allocation1 [shape = 'u32[72,128]{1,0:T(1,128)}', space=vmem, size = 0x9000, scoped, tag = 'internal scratch']
  %s0 = inlined_call_operand.vmem [shape: f32[8,512], index: 0, kind: input, shape index: {}]
  %s1 = inlined_call_operand.hbm [shape: f32[512,256], index: 1, kind: input, shape index: {}]
  %s2 = inlined_call_operand.vmem [shape: f32[1,256], index: 2, kind: input, shape index: {}]
  %s3 = inlined_call_operand.hbm [shape: f32[256,128], index: 3, kind: input, shape index: {}]
  %s4 = inlined_call_operand.vmem [shape: f32[1,128], index: 4, kind: input, shape index: {}]
  %s5 = inlined_call_operand.vmem [shape: f32[128,128], index: 5, kind: input, shape index: {}]
  %s6 = inlined_call_operand.vmem [shape: f32[1,128], index: 6, kind: input, shape index: {}]
  %s7 = inlined_call_operand.vmem [shape: f32[8,128], index: 7, kind: output, shape index: {}]
  %s8 = sld [smem:[#allocation0]]
  $region46: #{new_net_forward.1} parent=0
    _
  %s10 = ssub.s32 1, %s8
  %s11 = scalar_select 0, %s10, %s8
  $region1: #{new_net_forward.1} parent=0
    #allocation2 [shape = 'u8[524288]{0}', space=vmem, size = 0x80000, scoped, tag = 'input window, operand 1, single buffered']
    #allocation3 [shape = 's32[1]{0}', space=sflag, size = 0x4, scoped, tag = 'scoped memory for new_net_forward.1']
    #allocation4 [shape = 'u8[131072]{0}', space=vmem, size = 0x20000, scoped, tag = 'input window, operand 3, single buffered']
    #allocation5 [shape = 's32[1]{0}', space=sflag, size = 0x4, scoped, tag = 'scoped memory for new_net_forward.1']
    %12 = vsyncpa [#allocation3], 0
    %13 = vsyncpa [#allocation5], 0
    // Predicated region
    $region2: #{new_net_forward.1} parent=1 // pred_check
      _
    $region3: #{new_net_forward.1} parent=1 // pred_check_branch
      %15 = sbr.rel (0) target = $region5
    $region4: #{new_net_forward.1} parent=1 // pred_region
      _
    $region5: #{new_net_forward.1} parent=1 // pred_fallthru
      _
    // Predicated region
    $region6: #{new_net_forward.1} parent=1 // pred_check
      _
    $region7: #{new_net_forward.1} parent=1 // pred_check_branch
      %17 = sbr.rel (0) target = $region9
    $region8: #{new_net_forward.1} parent=1 // pred_region
      %19 = vsyncadd [#allocation3], 0
      %s20 = sshll.u32 %s1, 4
      %s21 = int_to_ptr.hbm [resolvable:$true] %s20
      %s22 = sshll.u32 [#allocation2], 4
      %s23 = int_to_ptr.vmem [resolvable:$true] %s22
      %28 = dma.hbm_to_vmem [thread:$0]  %s21, 16384, %s23, [#allocation3], 256, 256, 16
    $region9: #{new_net_forward.1} parent=1 // pred_fallthru
      _
    // Predicated region
    $region10: #{new_net_forward.1} parent=1 // pred_check
      _
    $region11: #{new_net_forward.1} parent=1 // pred_check_branch
      %30 = sbr.rel (0) target = $region13
    $region12: #{new_net_forward.1} parent=1 // pred_region
      _
    $region13: #{new_net_forward.1} parent=1 // pred_fallthru
      _
    // Predicated region
    $region14: #{new_net_forward.1} parent=1 // pred_check
      _
    $region15: #{new_net_forward.1} parent=1 // pred_check_branch
      %32 = sbr.rel (0) target = $region17
    $region16: #{new_net_forward.1} parent=1 // pred_region
      %34 = vsyncadd [#allocation5], 0
      %s35 = sshll.u32 %s3, 4
      %s36 = int_to_ptr.hbm [resolvable:$true] %s35
      %s37 = sshll.u32 [#allocation4], 4
      %s38 = int_to_ptr.vmem [resolvable:$true] %s37
      %43 = dma.hbm_to_vmem [thread:$0]  %s36, 4096, %s38, [#allocation5], 128, 128, 8
    $region17: #{new_net_forward.1} parent=1 // pred_fallthru
      _
    // Predicated region
    $region18: #{new_net_forward.1} parent=1 // pred_check
      _
    $region19: #{new_net_forward.1} parent=1 // pred_check_branch
      %45 = sbr.rel (0) target = $region21
    $region20: #{new_net_forward.1} parent=1 // pred_region
      _
    $region21: #{new_net_forward.1} parent=1 // pred_fallthru
      _
    // Predicated region
    $region22: #{new_net_forward.1} parent=1 // pred_check
      _
    $region23: #{new_net_forward.1} parent=1 // pred_check_branch
      %47 = sbr.rel (0) target = $region25
    $region24: #{new_net_forward.1} parent=1 // pred_region
      _
    $region25: #{new_net_forward.1} parent=1 // pred_fallthru
      _
    // Predicated region
    $region26: #{new_net_forward.1} parent=1 // pred_check
      _
    $region27: #{new_net_forward.1} parent=1 // pred_check_branch
      %49 = sbr.rel (0) target = $region29
    $region28: #{new_net_forward.1} parent=1 // pred_region
      _
    $region29: #{new_net_forward.1} parent=1 // pred_fallthru
      _
    // Predicated region
    $region30: #{new_net_forward.1} parent=1 // pred_check
      _
    $region31: #{new_net_forward.1} parent=1 // pred_check_branch
      %51 = sbr.rel (0) target = $region33
    $region32: #{new_net_forward.1} parent=1 // pred_region
      %53 = dma.done [#allocation3], 16384
    $region33: #{new_net_forward.1} parent=1 // pred_fallthru
      _
    // Predicated region
    $region34: #{new_net_forward.1} parent=1 // pred_check
      _
    $region35: #{new_net_forward.1} parent=1 // pred_check_branch
      %55 = sbr.rel (0) target = $region37
    $region36: #{new_net_forward.1} parent=1 // pred_region
      %57 = dma.done [#allocation5], 4096
    $region37: #{new_net_forward.1} parent=1 // pred_fallthru
      _
    %v58 = vld [vmem:[%s0] sm:$0xff]
    %v59 = vld [vmem:[%s0 + $0x8] sm:$0xff]
    %v60 = vld [vmem:[%s0 + $0x10] sm:$0xff]
    %v61 = vld [vmem:[%s0 + $0x18] sm:$0xff]
    %v62 = vld [vmem:[#allocation2] sm:$0xff]
    %v63 = vld [vmem:[#allocation2 + $0x8] sm:$0xff]
    %v64 = vld [vmem:[#allocation2 + $0x10] sm:$0xff]
    %v65 = vld [vmem:[#allocation2 + $0x18] sm:$0xff]
    %v66 = vld [vmem:[#allocation2 + $0x20] sm:$0xff]
    %v67 = vld [vmem:[#allocation2 + $0x28] sm:$0xff]
    %v68 = vld [vmem:[#allocation2 + $0x30] sm:$0xff]
    %v69 = vld [vmem:[#allocation2 + $0x38] sm:$0xff]
    %v70 = vld [vmem:[#allocation2 + $0x40] sm:$0xff]
    %v71 = vld [vmem:[#allocation2 + $0x48] sm:$0xff]
    %v72 = vld [vmem:[#allocation2 + $0x50] sm:$0xff]
    %v73 = vld [vmem:[#allocation2 + $0x58] sm:$0xff]
    %v74 = vld [vmem:[#allocation2 + $0x60] sm:$0xff]
    %v75 = vld [vmem:[#allocation2 + $0x68] sm:$0xff]
    %v76 = vld [vmem:[#allocation2 + $0x70] sm:$0xff]
    %v77 = vld [vmem:[#allocation2 + $0x78] sm:$0xff]
    %v78 = vld [vmem:[#allocation2 + $0x80] sm:$0xff]
    %v79 = vld [vmem:[#allocation2 + $0x88] sm:$0xff]
    %v80 = vld [vmem:[#allocation2 + $0x90] sm:$0xff]
    %v81 = vld [vmem:[#allocation2 + $0x98] sm:$0xff]
    %v82 = vld [vmem:[#allocation2 + $0xa0] sm:$0xff]
    %v83 = vld [vmem:[#allocation2 + $0xa8] sm:$0xff]
    %v84 = vld [vmem:[#allocation2 + $0xb0] sm:$0xff]
    %v85 = vld [vmem:[#allocation2 + $0xb8] sm:$0xff]
    %v86 = vld [vmem:[#allocation2 + $0xc0] sm:$0xff]
    %v87 = vld [vmem:[#allocation2 + $0xc8] sm:$0xff]
    %v88 = vld [vmem:[#allocation2 + $0xd0] sm:$0xff]
    %v89 = vld [vmem:[#allocation2 + $0xd8] sm:$0xff]
    %v90 = vld [vmem:[#allocation2 + $0xe0] sm:$0xff]
    %v91 = vld [vmem:[#allocation2 + $0xe8] sm:$0xff]
    %v92 = vld [vmem:[#allocation2 + $0xf0] sm:$0xff]
    %v93 = vld [vmem:[#allocation2 + $0xf8] sm:$0xff]
    %v94 = vld [vmem:[#allocation2 + $0x100] sm:$0xff]
    %v95 = vld [vmem:[#allocation2 + $0x108] sm:$0xff]
    %v96 = vld [vmem:[#allocation2 + $0x110] sm:$0xff]
    %v97 = vld [vmem:[#allocation2 + $0x118] sm:$0xff]
    %v98 = vld [vmem:[#allocation2 + $0x120] sm:$0xff]
    %v99 = vld [vmem:[#allocation2 + $0x128] sm:$0xff]
    %v100 = vld [vmem:[#allocation2 + $0x130] sm:$0xff]
    %v101 = vld [vmem:[#allocation2 + $0x138] sm:$0xff]
    %v102 = vld [vmem:[#allocation2 + $0x140] sm:$0xff]
    %v103 = vld [vmem:[#allocation2 + $0x148] sm:$0xff]
    %v104 = vld [vmem:[#allocation2 + $0x150] sm:$0xff]
    %v105 = vld [vmem:[#allocation2 + $0x158] sm:$0xff]
    %v106 = vld [vmem:[#allocation2 + $0x160] sm:$0xff]
    %v107 = vld [vmem:[#allocation2 + $0x168] sm:$0xff]
    %v108 = vld [vmem:[#allocation2 + $0x170] sm:$0xff]
    %v109 = vld [vmem:[#allocation2 + $0x178] sm:$0xff]
    %v110 = vld [vmem:[#allocation2 + $0x180] sm:$0xff]
    %v111 = vld [vmem:[#allocation2 + $0x188] sm:$0xff]
    %v112 = vld [vmem:[#allocation2 + $0x190] sm:$0xff]
    %v113 = vld [vmem:[#allocation2 + $0x198] sm:$0xff]
    %v114 = vld [vmem:[#allocation2 + $0x1a0] sm:$0xff]
    %v115 = vld [vmem:[#allocation2 + $0x1a8] sm:$0xff]
    %v116 = vld [vmem:[#allocation2 + $0x1b0] sm:$0xff]
    %v117 = vld [vmem:[#allocation2 + $0x1b8] sm:$0xff]
    %v118 = vld [vmem:[#allocation2 + $0x1c0] sm:$0xff]
    %v119 = vld [vmem:[#allocation2 + $0x1c8] sm:$0xff]
    %v120 = vld [vmem:[#allocation2 + $0x1d0] sm:$0xff]
    %v121 = vld [vmem:[#allocation2 + $0x1d8] sm:$0xff]
    %v122 = vld [vmem:[#allocation2 + $0x1e0] sm:$0xff]
    %v123 = vld [vmem:[#allocation2 + $0x1e8] sm:$0xff]
    %v124 = vld [vmem:[#allocation2 + $0x1f0] sm:$0xff]
    %v125 = vld [vmem:[#allocation2 + $0x1f8] sm:$0xff]
    %v126 = vld [vmem:[#allocation2 + $0x200] sm:$0xff]
    %v127 = vld [vmem:[#allocation2 + $0x208] sm:$0xff]
    %v128 = vld [vmem:[#allocation2 + $0x210] sm:$0xff]
    %v129 = vld [vmem:[#allocation2 + $0x218] sm:$0xff]
    %v130 = vld [vmem:[#allocation2 + $0x220] sm:$0xff]
    %v131 = vld [vmem:[#allocation2 + $0x228] sm:$0xff]
    %v132 = vld [vmem:[#allocation2 + $0x230] sm:$0xff]
    %v133 = vld [vmem:[#allocation2 + $0x238] sm:$0xff]
    %v134 = vld [vmem:[#allocation2 + $0x240] sm:$0xff]
    %v135 = vld [vmem:[#allocation2 + $0x248] sm:$0xff]
    %v136 = vld [vmem:[#allocation2 + $0x250] sm:$0xff]
    %v137 = vld [vmem:[#allocation2 + $0x258] sm:$0xff]
    %v138 = vld [vmem:[#allocation2 + $0x260] sm:$0xff]
    %v139 = vld [vmem:[#allocation2 + $0x268] sm:$0xff]
    %v140 = vld [vmem:[#allocation2 + $0x270] sm:$0xff]
    %v141 = vld [vmem:[#allocation2 + $0x278] sm:$0xff]
    %v142 = vld [vmem:[#allocation2 + $0x280] sm:$0xff]
    %v143 = vld [vmem:[#allocation2 + $0x288] sm:$0xff]
    %v144 = vld [vmem:[#allocation2 + $0x290] sm:$0xff]
    %v145 = vld [vmem:[#allocation2 + $0x298] sm:$0xff]
    %v146 = vld [vmem:[#allocation2 + $0x2a0] sm:$0xff]
    %v147 = vld [vmem:[#allocation2 + $0x2a8] sm:$0xff]
    %v148 = vld [vmem:[#allocation2 + $0x2b0] sm:$0xff]
    %v149 = vld [vmem:[#allocation2 + $0x2b8] sm:$0xff]
    %v150 = vld [vmem:[#allocation2 + $0x2c0] sm:$0xff]
    %v151 = vld [vmem:[#allocation2 + $0x2c8] sm:$0xff]
    %v152 = vld [vmem:[#allocation2 + $0x2d0] sm:$0xff]
    %v153 = vld [vmem:[#allocation2 + $0x2d8] sm:$0xff]
    %v154 = vld [vmem:[#allocation2 + $0x2e0] sm:$0xff]
    %v155 = vld [vmem:[#allocation2 + $0x2e8] sm:$0xff]
    %v156 = vld [vmem:[#allocation2 + $0x2f0] sm:$0xff]
    %v157 = vld [vmem:[#allocation2 + $0x2f8] sm:$0xff]
    %v158 = vld [vmem:[#allocation2 + $0x300] sm:$0xff]
    %v159 = vld [vmem:[#allocation2 + $0x308] sm:$0xff]
    %v160 = vld [vmem:[#allocation2 + $0x310] sm:$0xff]
    %v161 = vld [vmem:[#allocation2 + $0x318] sm:$0xff]
    %v162 = vld [vmem:[#allocation2 + $0x320] sm:$0xff]
    %v163 = vld [vmem:[#allocation2 + $0x328] sm:$0xff]
    %v164 = vld [vmem:[#allocation2 + $0x330] sm:$0xff]
    %v165 = vld [vmem:[#allocation2 + $0x338] sm:$0xff]
    %v166 = vld [vmem:[#allocation2 + $0x340] sm:$0xff]
    %v167 = vld [vmem:[#allocation2 + $0x348] sm:$0xff]
    %v168 = vld [vmem:[#allocation2 + $0x350] sm:$0xff]
    %v169 = vld [vmem:[#allocation2 + $0x358] sm:$0xff]
    %v170 = vld [vmem:[#allocation2 + $0x360] sm:$0xff]
    %v171 = vld [vmem:[#allocation2 + $0x368] sm:$0xff]
    %v172 = vld [vmem:[#allocation2 + $0x370] sm:$0xff]
    %v173 = vld [vmem:[#allocation2 + $0x378] sm:$0xff]
    %v174 = vld [vmem:[#allocation2 + $0x380] sm:$0xff]
    %v175 = vld [vmem:[#allocation2 + $0x388] sm:$0xff]
    %v176 = vld [vmem:[#allocation2 + $0x390] sm:$0xff]
    %v177 = vld [vmem:[#allocation2 + $0x398] sm:$0xff]
    %v178 = vld [vmem:[#allocation2 + $0x3a0] sm:$0xff]
    %v179 = vld [vmem:[#allocation2 + $0x3a8] sm:$0xff]
    %v180 = vld [vmem:[#allocation2 + $0x3b0] sm:$0xff]
    %v181 = vld [vmem:[#allocation2 + $0x3b8] sm:$0xff]
    %v182 = vld [vmem:[#allocation2 + $0x3c0] sm:$0xff]
    %v183 = vld [vmem:[#allocation2 + $0x3c8] sm:$0xff]
    %v184 = vld [vmem:[#allocation2 + $0x3d0] sm:$0xff]
    %v185 = vld [vmem:[#allocation2 + $0x3d8] sm:$0xff]
    %v186 = vld [vmem:[#allocation2 + $0x3e0] sm:$0xff]
    %v187 = vld [vmem:[#allocation2 + $0x3e8] sm:$0xff]
    %v188 = vld [vmem:[#allocation2 + $0x3f0] sm:$0xff]
    %v189 = vld [vmem:[#allocation2 + $0x3f8] sm:$0xff]
    %v190 = vld [vmem:[%s2] sm:$0x3]
    %v192 = vperm.slane %v190, 0
    %v193 = vperm.slane %v190, 1
    %196 = vmatpush.msra.mxu0 %v92
    %197 = vmatpush.msra.mxu0 %v90
    %198 = vmatpush.msra.mxu0 %v88
    %199 = vmatpush.msra.mxu0 %v86
    %200 = vmatpush.msra.mxu0 %v84
    %201 = vmatpush.msra.mxu0 %v82
    %202 = vmatpush.msra.mxu0 %v80
    %203 = vmatpush.msra.mxu0 %v78
    %204 = vmatpush.msra.mxu0 %v76
    %205 = vmatpush.msra.mxu0 %v74
    %206 = vmatpush.msra.mxu0 %v72
    %207 = vmatpush.msra.mxu0 %v70
    %208 = vmatpush.msra.mxu0 %v68
    %209 = vmatpush.msra.mxu0 %v66
    %210 = vmatpush.msra.mxu0 %v64
    %211 = vmatpush.msra.mxu0 %v62
    %212 = vmatmul.f32.gmra.mxu0 %v58
    %v213 = vpop.f32.mrf.mxu0
    %v214 = vadd.f32 %v192, %v213
    %215 = vdwg.mxu0
    %216 = vmatpush.msra.mxu0 %v124
    %217 = vmatpush.msra.mxu0 %v122
    %218 = vmatpush.msra.mxu0 %v120
    %219 = vmatpush.msra.mxu0 %v118
    %220 = vmatpush.msra.mxu0 %v116
    %221 = vmatpush.msra.mxu0 %v114
    %222 = vmatpush.msra.mxu0 %v112
    %223 = vmatpush.msra.mxu0 %v110
    %224 = vmatpush.msra.mxu0 %v108
    %225 = vmatpush.msra.mxu0 %v106
    %226 = vmatpush.msra.mxu0 %v104
    %227 = vmatpush.msra.mxu0 %v102
    %228 = vmatpush.msra.mxu0 %v100
    %229 = vmatpush.msra.mxu0 %v98
    %230 = vmatpush.msra.mxu0 %v96
    %231 = vmatpush.msra.mxu0 %v94
    %232 = vmatmul.f32.gmra.mxu0 %v59
    %v233 = vpop.f32.mrf.mxu0
    %v234 = vadd.f32 %v214, %v233
    %235 = vdwg.mxu0
    %236 = vmatpush.msra.mxu0 %v156
    %237 = vmatpush.msra.mxu0 %v154
    %238 = vmatpush.msra.mxu0 %v152
    %239 = vmatpush.msra.mxu0 %v150
    %240 = vmatpush.msra.mxu0 %v148
    %241 = vmatpush.msra.mxu0 %v146
    %242 = vmatpush.msra.mxu0 %v144
    %243 = vmatpush.msra.mxu0 %v142
    %244 = vmatpush.msra.mxu0 %v140
    %245 = vmatpush.msra.mxu0 %v138
    %246 = vmatpush.msra.mxu0 %v136
    %247 = vmatpush.msra.mxu0 %v134
    %248 = vmatpush.msra.mxu0 %v132
    %249 = vmatpush.msra.mxu0 %v130
    %250 = vmatpush.msra.mxu0 %v128
    %251 = vmatpush.msra.mxu0 %v126
    %252 = vmatmul.f32.gmra.mxu0 %v60
    %v253 = vpop.f32.mrf.mxu0
    %v254 = vadd.f32 %v234, %v253
    %255 = vdwg.mxu0
    %256 = vmatpush.msra.mxu0 %v188
    %257 = vmatpush.msra.mxu0 %v186
    %258 = vmatpush.msra.mxu0 %v184
    %259 = vmatpush.msra.mxu0 %v182
    %260 = vmatpush.msra.mxu0 %v180
    %261 = vmatpush.msra.mxu0 %v178
    %262 = vmatpush.msra.mxu0 %v176
    %263 = vmatpush.msra.mxu0 %v174
    %264 = vmatpush.msra.mxu0 %v172
    %265 = vmatpush.msra.mxu0 %v170
    %266 = vmatpush.msra.mxu0 %v168
    %267 = vmatpush.msra.mxu0 %v166
    %268 = vmatpush.msra.mxu0 %v164
    %269 = vmatpush.msra.mxu0 %v162
    %270 = vmatpush.msra.mxu0 %v160
    %271 = vmatpush.msra.mxu0 %v158
    %272 = vmatmul.f32.gmra.mxu0 %v61
    %v273 = vpop.f32.mrf.mxu0
    %v274 = vadd.f32 %v254, %v273
    %275 = vdwg.mxu0
    %276 = vmatpush.msra.mxu0 %v93
    %277 = vmatpush.msra.mxu0 %v91
    %278 = vmatpush.msra.mxu0 %v89
    %279 = vmatpush.msra.mxu0 %v87
    %280 = vmatpush.msra.mxu0 %v85
    %281 = vmatpush.msra.mxu0 %v83
    %282 = vmatpush.msra.mxu0 %v81
    %283 = vmatpush.msra.mxu0 %v79
    %284 = vmatpush.msra.mxu0 %v77
    %285 = vmatpush.msra.mxu0 %v75
    %286 = vmatpush.msra.mxu0 %v73
    %287 = vmatpush.msra.mxu0 %v71
    %288 = vmatpush.msra.mxu0 %v69
    %289 = vmatpush.msra.mxu0 %v67
    %290 = vmatpush.msra.mxu0 %v65
    %291 = vmatpush.msra.mxu0 %v63
    %292 = vmatmul.f32.gmra.mxu0 %v58
    %v293 = vpop.f32.mrf.mxu0
    %v294 = vadd.f32 %v193, %v293
    %295 = vdwg.mxu0
    %296 = vmatpush.msra.mxu0 %v125
    %297 = vmatpush.msra.mxu0 %v123
    %298 = vmatpush.msra.mxu0 %v121
    %299 = vmatpush.msra.mxu0 %v119
    %300 = vmatpush.msra.mxu0 %v117
    %301 = vmatpush.msra.mxu0 %v115
    %302 = vmatpush.msra.mxu0 %v113
    %303 = vmatpush.msra.mxu0 %v111
    %304 = vmatpush.msra.mxu0 %v109
    %305 = vmatpush.msra.mxu0 %v107
    %306 = vmatpush.msra.mxu0 %v105
    %307 = vmatpush.msra.mxu0 %v103
    %308 = vmatpush.msra.mxu0 %v101
    %309 = vmatpush.msra.mxu0 %v99
    %310 = vmatpush.msra.mxu0 %v97
    %311 = vmatpush.msra.mxu0 %v95
    %312 = vmatmul.f32.gmra.mxu0 %v59
    %v313 = vpop.f32.mrf.mxu0
    %v314 = vadd.f32 %v294, %v313
    %315 = vdwg.mxu0
    %316 = vmatpush.msra.mxu0 %v157
    %317 = vmatpush.msra.mxu0 %v155
    %318 = vmatpush.msra.mxu0 %v153
    %319 = vmatpush.msra.mxu0 %v151
    %320 = vmatpush.msra.mxu0 %v149
    %321 = vmatpush.msra.mxu0 %v147
    %322 = vmatpush.msra.mxu0 %v145
    %323 = vmatpush.msra.mxu0 %v143
    %324 = vmatpush.msra.mxu0 %v141
    %325 = vmatpush.msra.mxu0 %v139
    %326 = vmatpush.msra.mxu0 %v137
    %327 = vmatpush.msra.mxu0 %v135
    %328 = vmatpush.msra.mxu0 %v133
    %329 = vmatpush.msra.mxu0 %v131
    %330 = vmatpush.msra.mxu0 %v129
    %331 = vmatpush.msra.mxu0 %v127
    %332 = vmatmul.f32.gmra.mxu0 %v60
    %v333 = vpop.f32.mrf.mxu0
    %v334 = vadd.f32 %v314, %v333
    %335 = vdwg.mxu0
    %336 = vmatpush.msra.mxu0 %v189
    %337 = vmatpush.msra.mxu0 %v187
    %338 = vmatpush.msra.mxu0 %v185
    %339 = vmatpush.msra.mxu0 %v183
    %340 = vmatpush.msra.mxu0 %v181
    %341 = vmatpush.msra.mxu0 %v179
    %342 = vmatpush.msra.mxu0 %v177
    %343 = vmatpush.msra.mxu0 %v175
    %344 = vmatpush.msra.mxu0 %v173
    %345 = vmatpush.msra.mxu0 %v171
    %346 = vmatpush.msra.mxu0 %v169
    %347 = vmatpush.msra.mxu0 %v167
    %348 = vmatpush.msra.mxu0 %v165
    %349 = vmatpush.msra.mxu0 %v163
    %350 = vmatpush.msra.mxu0 %v161
    %351 = vmatpush.msra.mxu0 %v159
    %352 = vmatmul.f32.gmra.mxu0 %v61
    %v353 = vpop.f32.mrf.mxu0
    %v354 = vadd.f32 %v334, %v353
    %355 = vdwg.mxu0
    %v356 = vld [vmem:[#allocation4] sm:$0xff]
    %v357 = vld [vmem:[#allocation4 + $0x8] sm:$0xff]
    %v358 = vld [vmem:[#allocation4 + $0x10] sm:$0xff]
    %v359 = vld [vmem:[#allocation4 + $0x18] sm:$0xff]
    %v360 = vld [vmem:[#allocation4 + $0x20] sm:$0xff]
    %v361 = vld [vmem:[#allocation4 + $0x28] sm:$0xff]
    %v362 = vld [vmem:[#allocation4 + $0x30] sm:$0xff]
    %v363 = vld [vmem:[#allocation4 + $0x38] sm:$0xff]
    %v364 = vld [vmem:[#allocation4 + $0x40] sm:$0xff]
    %v365 = vld [vmem:[#allocation4 + $0x48] sm:$0xff]
    %v366 = vld [vmem:[#allocation4 + $0x50] sm:$0xff]
    %v367 = vld [vmem:[#allocation4 + $0x58] sm:$0xff]
    %v368 = vld [vmem:[#allocation4 + $0x60] sm:$0xff]
    %v369 = vld [vmem:[#allocation4 + $0x68] sm:$0xff]
    %v370 = vld [vmem:[#allocation4 + $0x70] sm:$0xff]
    %v371 = vld [vmem:[#allocation4 + $0x78] sm:$0xff]
    %v372 = vld [vmem:[#allocation4 + $0x80] sm:$0xff]
    %v373 = vld [vmem:[#allocation4 + $0x88] sm:$0xff]
    %v374 = vld [vmem:[#allocation4 + $0x90] sm:$0xff]
    %v375 = vld [vmem:[#allocation4 + $0x98] sm:$0xff]
    %v376 = vld [vmem:[#allocation4 + $0xa0] sm:$0xff]
    %v377 = vld [vmem:[#allocation4 + $0xa8] sm:$0xff]
    %v378 = vld [vmem:[#allocation4 + $0xb0] sm:$0xff]
    %v379 = vld [vmem:[#allocation4 + $0xb8] sm:$0xff]
    %v380 = vld [vmem:[#allocation4 + $0xc0] sm:$0xff]
    %v381 = vld [vmem:[#allocation4 + $0xc8] sm:$0xff]
    %v382 = vld [vmem:[#allocation4 + $0xd0] sm:$0xff]
    %v383 = vld [vmem:[#allocation4 + $0xd8] sm:$0xff]
    %v384 = vld [vmem:[#allocation4 + $0xe0] sm:$0xff]
    %v385 = vld [vmem:[#allocation4 + $0xe8] sm:$0xff]
    %v386 = vld [vmem:[#allocation4 + $0xf0] sm:$0xff]
    %v387 = vld [vmem:[#allocation4 + $0xf8] sm:$0xff]
    %v388 = vld [vmem:[%s4] sm:$0x1]
    %v390 = vperm.slane %v388, 0
    %392 = vmatpush.msra.mxu0 %v371
    %393 = vmatpush.msra.mxu0 %v370
    %394 = vmatpush.msra.mxu0 %v369
    %395 = vmatpush.msra.mxu0 %v368
    %396 = vmatpush.msra.mxu0 %v367
    %397 = vmatpush.msra.mxu0 %v366
    %398 = vmatpush.msra.mxu0 %v365
    %399 = vmatpush.msra.mxu0 %v364
    %400 = vmatpush.msra.mxu0 %v363
    %401 = vmatpush.msra.mxu0 %v362
    %402 = vmatpush.msra.mxu0 %v361
    %403 = vmatpush.msra.mxu0 %v360
    %404 = vmatpush.msra.mxu0 %v359
    %405 = vmatpush.msra.mxu0 %v358
    %406 = vmatpush.msra.mxu0 %v357
    %407 = vmatpush.msra.mxu0 %v356
    %408 = vmatmul.f32.gmra.mxu0 %v274
    %v409 = vpop.f32.mrf.mxu0
    %v410 = vadd.f32 %v390, %v409
    %411 = vdwg.mxu0
    %412 = vmatpush.msra.mxu0 %v387
    %413 = vmatpush.msra.mxu0 %v386
    %414 = vmatpush.msra.mxu0 %v385
    %415 = vmatpush.msra.mxu0 %v384
    %416 = vmatpush.msra.mxu0 %v383
    %417 = vmatpush.msra.mxu0 %v382
    %418 = vmatpush.msra.mxu0 %v381
    %419 = vmatpush.msra.mxu0 %v380
    %420 = vmatpush.msra.mxu0 %v379
    %421 = vmatpush.msra.mxu0 %v378
    %422 = vmatpush.msra.mxu0 %v377
    %423 = vmatpush.msra.mxu0 %v376
    %424 = vmatpush.msra.mxu0 %v375
    %425 = vmatpush.msra.mxu0 %v374
    %426 = vmatpush.msra.mxu0 %v373
    %427 = vmatpush.msra.mxu0 %v372
    %428 = vmatmul.f32.gmra.mxu0 %v354
    %v429 = vpop.f32.mrf.mxu0
    %v430 = vadd.f32 %v410, %v429
    %431 = vdwg.mxu0
    %v432 = vmax.f32 %v430, 0.0
    %v433 = vld [vmem:[%s5] sm:$0xff]
    %v434 = vld [vmem:[%s5 + $0x8] sm:$0xff]
    %v435 = vld [vmem:[%s5 + $0x10] sm:$0xff]
    %v436 = vld [vmem:[%s5 + $0x18] sm:$0xff]
    %v437 = vld [vmem:[%s5 + $0x20] sm:$0xff]
    %v438 = vld [vmem:[%s5 + $0x28] sm:$0xff]
    %v439 = vld [vmem:[%s5 + $0x30] sm:$0xff]
    %v440 = vld [vmem:[%s5 + $0x38] sm:$0xff]
    %v441 = vld [vmem:[%s5 + $0x40] sm:$0xff]
    %v442 = vld [vmem:[%s5 + $0x48] sm:$0xff]
    %v443 = vld [vmem:[%s5 + $0x50] sm:$0xff]
    %v444 = vld [vmem:[%s5 + $0x58] sm:$0xff]
    %v445 = vld [vmem:[%s5 + $0x60] sm:$0xff]
    %v446 = vld [vmem:[%s5 + $0x68] sm:$0xff]
    %v447 = vld [vmem:[%s5 + $0x70] sm:$0xff]
    %v448 = vld [vmem:[%s5 + $0x78] sm:$0xff]
    %v449 = vld [vmem:[%s6] sm:$0x1]
    %v451 = vperm.slane %v449, 0
    %453 = vmatpush.msra.mxu0 %v448
    %454 = vmatpush.msra.mxu0 %v447
    %455 = vmatpush.msra.mxu0 %v446
    %456 = vmatpush.msra.mxu0 %v445
    %457 = vmatpush.msra.mxu0 %v444
    %458 = vmatpush.msra.mxu0 %v443
    %459 = vmatpush.msra.mxu0 %v442
    %460 = vmatpush.msra.mxu0 %v441
    %461 = vmatpush.msra.mxu0 %v440
    %462 = vmatpush.msra.mxu0 %v439
    %463 = vmatpush.msra.mxu0 %v438
    %464 = vmatpush.msra.mxu0 %v437
    %465 = vmatpush.msra.mxu0 %v436
    %466 = vmatpush.msra.mxu0 %v435
    %467 = vmatpush.msra.mxu0 %v434
    %468 = vmatpush.msra.mxu0 %v433
    %469 = vmatmul.f32.gmra.mxu0 %v432
    %v470 = vpop.f32.mrf.mxu0
    %v471 = vadd.f32 %v451, %v470
    %472 = vdwg.mxu0
    %473 = vst [vmem:[%s7] sm:$0xff] %v471
    // Predicated region
    $region38: #{new_net_forward.1} parent=1 // pred_check
      _
    $region39: #{new_net_forward.1} parent=1 // pred_check_branch
      %475 = sbr.rel (0) target = $region41
    $region40: #{new_net_forward.1} parent=1 // pred_region
      _
    $region41: #{new_net_forward.1} parent=1 // pred_fallthru
      _
    // Predicated region
    $region42: #{new_net_forward.1} parent=1 // pred_check
      _
    $region43: #{new_net_forward.1} parent=1 // pred_check_branch
      %477 = sbr.rel (0) target = $region45
    $region44: #{new_net_forward.1} parent=1 // pred_region
      _
    $region45: #{new_net_forward.1} parent=1 // pred_fallthru
      _
    %478 = vsyncpa [#allocation3], 1
    %479 = vsyncpa [#allocation5], 1

</llo_original>
